<compile_context>
chip_gen: v5e
topology: v5e:2x2
jax: 0.10.0
libtpu: 0.0.40
codegen_flags: <defaults>
</compile_context>

<pallas_src>
import functools

import jax
import jax.numpy as jnp
from jax.experimental import pallas as pl
from jax.experimental.pallas import tpu as pltpu


def _round_up(x: int, m: int) -> int:
    return ((x + m - 1) // m) * m


def _vmem_limit_bytes() -> int:
    """Generation-aware scoped-VMEM budget (v5e/v6e: ~96-110 MiB, v7x: ~48 MiB)."""
    try:
        cap = pltpu.get_tpu_info().vmem_capacity_bytes
        return int(min(cap * 3 // 4, 110 * 1024 * 1024))
    except Exception:
        return 32 * 1024 * 1024  # conservative fallback


# --------------------------------------------------------------------------- #
# SMALL path: whole MLP in a single pallas_call invocation (no grid).
# --------------------------------------------------------------------------- #
def _mlp_small_kernel(x_ref, w_ref, b_ref, o_ref, *, n_layers):
    """x_ref [Bpad,Fpad] f32, w_ref [L,Fpad,Fpad] bf16 (pre-transposed [in,out]),
    b_ref [L,1,Fpad] f32, o_ref [L,Bpad,Fpad] bf16."""
    a = x_ref[...].astype(jnp.float32)                       # [Bpad, Fpad]
    for i in range(n_layers):                                 # static unrolled loop
        y = jnp.dot(a.astype(jnp.bfloat16), w_ref[i],
                    preferred_element_type=jnp.float32)       # f32 accumulation
        y = y + b_ref[i]                                      # [1,Fpad] broadcast
        if i < n_layers - 1:                                  # static ReLU gate
            y = jnp.maximum(y, 0.0)
        o_ref[i] = y.astype(o_ref.dtype)                      # lane-dense store
        a = y                                                 # f32 carry in vregs


def _mlp_small_pallas(x_pad, w_stack, b_stack, out_dtype):
    n_layers, f_pad, _ = w_stack.shape
    b_pad = x_pad.shape[0]
    kernel = functools.partial(_mlp_small_kernel, n_layers=n_layers)
    return pl.pallas_call(
        kernel,
        out_shape=jax.ShapeDtypeStruct((n_layers, b_pad, f_pad), out_dtype),
        in_specs=[
            pl.BlockSpec(memory_space=pltpu.MemorySpace.VMEM),
            pl.BlockSpec(memory_space=pltpu.MemorySpace.VMEM),
            pl.BlockSpec(memory_space=pltpu.MemorySpace.VMEM),
        ],
        out_specs=pl.BlockSpec(memory_space=pltpu.MemorySpace.VMEM),
        compiler_params=pltpu.CompilerParams(
            vmem_limit_bytes=_vmem_limit_bytes(),
        ),
    )(x_pad, w_stack, b_stack)


# --------------------------------------------------------------------------- #
# GRID path: one layer per grid step; activation carried in VMEM scratch.
# --------------------------------------------------------------------------- #
def _mlp_layer_kernel(x_hbm_ref, w_ref, b_ref, o_ref, act_ref):
    """x_hbm_ref [Bpad,Fpad] f32 (HBM, read once), w_ref [1,Fpad,Fpad] bf16,
    b_ref [1,1,Fpad] f32, o_ref [1,Bpad,Fpad] bf16, act_ref [Bpad,Fpad] f32."""
    layer = pl.program_id(0)
    n_layers = pl.num_programs(0)

    @pl.when(layer == 0)
    def _():
        # x is only needed at layer 0: DMA it straight into the activation
        # scratch instead of holding it resident (double-buffered) for all L steps.
        pltpu.sync_copy(x_hbm_ref, act_ref)

    a = act_ref[...]                                          # [Bpad, Fpad] f32
    y = jnp.dot(a.astype(jnp.bfloat16), w_ref[0],
                preferred_element_type=jnp.float32)
    y = y + b_ref[0]

    @pl.when(layer < n_layers - 1)
    def _():
        yr = jnp.maximum(y, 0.0)
        act_ref[...] = yr
        o_ref[0] = yr.astype(o_ref.dtype)

    @pl.when(layer == n_layers - 1)
    def _():
        act_ref[...] = y
        o_ref[0] = y.astype(o_ref.dtype)


def _mlp_grid_pallas(x_pad, w_stack, b_stack, out_dtype):
    n_layers, f_pad, _ = w_stack.shape
    b_pad = x_pad.shape[0]
    # TODO(synk): for very wide layers (v7x, Fpad >= 2048) tile the reduction
    # dimension K of the weight (block (1, tk, Fpad) + accumulate), and for
    # very uneven architectures go fully ragged with PrefetchScalarGridSpec
    # carrying per-layer (in_f, out_f) dims; also add a parallel batch-tile
    # grid axis for the 2-TC megacore when batch is large.
    return pl.pallas_call(
        _mlp_layer_kernel,
        out_shape=jax.ShapeDtypeStruct((n_layers, b_pad, f_pad), out_dtype),
        grid=(n_layers,),
        in_specs=[
            pl.BlockSpec(memory_space=pl.ANY),                      # x stays in HBM
            pl.BlockSpec((1, f_pad, f_pad), lambda l: (l, 0, 0)),   # this layer's W (bf16)
            pl.BlockSpec((1, 1, f_pad), lambda l: (l, 0, 0)),       # this layer's bias
        ],
        out_specs=pl.BlockSpec((1, b_pad, f_pad), lambda l: (l, 0, 0)),
        scratch_shapes=[pltpu.VMEM((b_pad, f_pad), jnp.float32)],
        compiler_params=pltpu.CompilerParams(
            dimension_semantics=("arbitrary",),   # layer axis carries the act dependency
            vmem_limit_bytes=_vmem_limit_bytes(),
        ),
    )(x_pad, w_stack, b_stack)


# --------------------------------------------------------------------------- #
# Module wrapper.
# --------------------------------------------------------------------------- #
class SequentialNetworkPallas:
    """JAX/Pallas port of the PyTorch SequentialNetwork module."""

    # Use the single-invocation path when the bf16 weight slab is at most this big.
    _SMALL_PATH_WEIGHT_BYTES = 8 * 1024 * 1024

    def __init__(self, architecture, key):
        self.architecture = tuple(architecture)
        self.weights = []   # f32 master copies (used by the reference)
        self.biases = []
        for in_f, out_f in zip(architecture[:-1], architecture[1:]):
            key, wk, bk = jax.random.split(key, 3)
            # Deterministic init mimicking nn.Linear's uniform(-1/sqrt(in), 1/sqrt(in)).
            bound = 1.0 / (in_f ** 0.5)
            w = jax.random.uniform(wk, (out_f, in_f), jnp.float32, -bound, bound)
            b = jax.random.uniform(bk, (out_f,), jnp.float32, -bound, bound)
            self.weights.append(w)
            self.biases.append(b)

        # One-time host-side packing: pad + pre-transpose + stack, weights in bf16.
        self.f_pad = max(_round_up(f, 128) for f in self.architecture)
        n_layers = len(self.weights)
        w_stack = jnp.zeros((n_layers, self.f_pad, self.f_pad), jnp.bfloat16)
        b_stack = jnp.zeros((n_layers, 1, self.f_pad), jnp.float32)
        for i, (w, b) in enumerate(zip(self.weights, self.biases)):
            out_f, in_f = w.shape
            w_stack = w_stack.at[i, :in_f, :out_f].set(w.T.astype(jnp.bfloat16))
            b_stack = b_stack.at[i, 0, :out_f].set(b)
        self.w_stack = w_stack
        self.b_stack = b_stack
        self.use_small_path = (w_stack.size * 2) <= self._SMALL_PATH_WEIGHT_BYTES

    def forward(self, x, force_grid_path=False):
        # x: [batch, in_features]
        batch, in_f = x.shape
        assert in_f == self.architecture[0]

        b_pad = _round_up(max(batch, 1), 16)   # bf16 sublane packing
        x_pad = (jnp.zeros((b_pad, self.f_pad), jnp.float32)
                 .at[:batch, :in_f].set(x.astype(jnp.float32)))

        if self.use_small_path and not force_grid_path:
            acts_pad = _mlp_small_pallas(x_pad, self.w_stack, self.b_stack, jnp.bfloat16)
        else:
            acts_pad = _mlp_grid_pallas(x_pad, self.w_stack, self.b_stack, jnp.bfloat16)

        # Match the PyTorch module: flattened input + flattened output of each layer.
        all_activations = [x.reshape(-1)]
        for i, out_f in enumerate(self.architecture[1:]):
            all_activations.append(
                acts_pad[i, :batch, :out_f].astype(jnp.float32).reshape(-1))
        return all_activations


def _reference_forward(net, x):
    """Pure-JAX reference matching the kernel's bf16-operand / f32-accumulate math."""
    acts = [x.reshape(-1)]
    a = x.astype(jnp.float32)
    n = len(net.weights)
    for i, (w, b) in enumerate(zip(net.weights, net.biases)):
        y = jnp.dot(a.astype(jnp.bfloat16), w.T.astype(jnp.bfloat16),
                    preferred_element_type=jnp.float32) + b
        if i < n - 1:
            y = jnp.maximum(y, 0.0)
        acts.append(y.astype(jnp.bfloat16).astype(jnp.float32).reshape(-1))
        a = y
    return acts


if __name__ == "__main__":
    key = jax.random.PRNGKey(0)
    key, xk, pk = jax.random.split(key, 3)

    architecture = (16, 32, 32, 8)   # small MLP: 16 -> 32 -> 32 -> 8
    batch = 2

    net = SequentialNetworkPallas(architecture, pk)
    x = jax.random.normal(xk, (batch, architecture[0]), jnp.float32)

    ref = _reference_forward(net, x)
    ref = [jax.block_until_ready(r) for r in ref]

    # Path A: single-invocation fused kernel (used automatically for small nets).
    acts_small = net.forward(x)
    acts_small = [jax.block_until_ready(a) for a in acts_small]

    # Path B: per-layer grid path (what large nets use) — forced here to exercise it.
    acts_grid = net.forward(x, force_grid_path=True)
    acts_grid = [jax.block_until_ready(a) for a in acts_grid]

    for got in (acts_small, acts_grid):
        for a, r in zip(got, ref):
            assert a.shape == r.shape
            assert jnp.allclose(a, r, atol=2e-2, rtol=2e-2), "mismatch vs reference"

    print("KERNEL_OK")
</pallas_src>

<mosaic_0001>
module attributes {stable_mosaic.version = 11 : i64} {
  func.func @_mlp_small_kernel(%arg0: memref<16x128xf32, #tpu.memory_space<vmem>>, %arg1: memref<3x128x128xbf16, #tpu.memory_space<vmem>>, %arg2: memref<3x1x128xf32, #tpu.memory_space<vmem>>, %arg3: memref<3x16x128xbf16, #tpu.memory_space<vmem>>) attributes {dimension_semantics = [], scalar_prefetch = 0 : i64, scratch_operands = 0 : i64, tpu.core_type = #tpu.core_type<tc>} {
    %c0 = arith.constant 0 : index
    %c0_0 = arith.constant 0 : index
    %0 = vector.load %arg0[%c0, %c0_0] : memref<16x128xf32, #tpu.memory_space<vmem>>, vector<16x128xf32>
    %1 = arith.truncf %0 : vector<16x128xf32> to vector<16x128xbf16>
    %c0_1 = arith.constant 0 : index
    %c0_2 = arith.constant 0 : index
    %c0_3 = arith.constant 0 : index
    %2 = vector.load %arg1[%c0_1, %c0_2, %c0_3] : memref<3x128x128xbf16, #tpu.memory_space<vmem>>, vector<1x128x128xbf16>
    %3 = vector.shape_cast %2 : vector<1x128x128xbf16> to vector<128x128xbf16>
    %cst = arith.constant dense<0.000000e+00> : vector<16x128xf32>
    %4 = tpu.matmul %1, %3, %cst {dimension_numbers = #tpu.dot_dimension_numbers<[1], [0], [0], [1], [0, 0, 1, 1], [], []>} : vector<16x128xbf16>, vector<128x128xbf16>, vector<16x128xf32> -> vector<16x128xf32>
    %c0_4 = arith.constant 0 : index
    %c0_5 = arith.constant 0 : index
    %c0_6 = arith.constant 0 : index
    %5 = vector.load %arg2[%c0_4, %c0_5, %c0_6] : memref<3x1x128xf32, #tpu.memory_space<vmem>>, vector<1x1x128xf32>
    %6 = vector.shape_cast %5 : vector<1x1x128xf32> to vector<1x128xf32>
    %7 = vector.broadcast %6 : vector<1x128xf32> to vector<16x128xf32>
    %8 = arith.addf %4, %7 : vector<16x128xf32>
    %cst_7 = arith.constant 0.000000e+00 : f32
    %9 = vector.broadcast %cst_7 : f32 to vector<16x128xf32>
    %10 = arith.maximumf %8, %9 : vector<16x128xf32>
    %11 = arith.truncf %10 : vector<16x128xf32> to vector<16x128xbf16>
    %c0_8 = arith.constant 0 : index
    %c0_9 = arith.constant 0 : index
    %c0_10 = arith.constant 0 : index
    %12 = vector.load %arg3[%c0_8, %c0_9, %c0_10] : memref<3x16x128xbf16, #tpu.memory_space<vmem>>, vector<1x16x128xbf16>
    %13 = vector.shape_cast %12 : vector<1x16x128xbf16> to vector<16x128xbf16>
    %14 = vector.shape_cast %11 : vector<16x128xbf16> to vector<1x16x128xbf16>
    tpu.vector_store %arg3[%c0_8, %c0_9, %c0_10], %14 {strides = array<i32>} : memref<3x16x128xbf16, #tpu.memory_space<vmem>>, vector<1x16x128xbf16>,
    %15 = arith.truncf %10 : vector<16x128xf32> to vector<16x128xbf16>
    %c1 = arith.constant 1 : index
    %c0_11 = arith.constant 0 : index
    %c0_12 = arith.constant 0 : index
    %16 = vector.load %arg1[%c1, %c0_11, %c0_12] : memref<3x128x128xbf16, #tpu.memory_space<vmem>>, vector<1x128x128xbf16>
    %17 = vector.shape_cast %16 : vector<1x128x128xbf16> to vector<128x128xbf16>
    %cst_13 = arith.constant dense<0.000000e+00> : vector<16x128xf32>
    %18 = tpu.matmul %15, %17, %cst_13 {dimension_numbers = #tpu.dot_dimension_numbers<[1], [0], [0], [1], [0, 0, 1, 1], [], []>} : vector<16x128xbf16>, vector<128x128xbf16>, vector<16x128xf32> -> vector<16x128xf32>
    %c1_14 = arith.constant 1 : index
    %c0_15 = arith.constant 0 : index
    %c0_16 = arith.constant 0 : index
    %19 = vector.load %arg2[%c1_14, %c0_15, %c0_16] : memref<3x1x128xf32, #tpu.memory_space<vmem>>, vector<1x1x128xf32>
    %20 = vector.shape_cast %19 : vector<1x1x128xf32> to vector<1x128xf32>
    %21 = vector.broadcast %20 : vector<1x128xf32> to vector<16x128xf32>
    %22 = arith.addf %18, %21 : vector<16x128xf32>
    %cst_17 = arith.constant 0.000000e+00 : f32
    %23 = vector.broadcast %cst_17 : f32 to vector<16x128xf32>
    %24 = arith.maximumf %22, %23 : vector<16x128xf32>
    %25 = arith.truncf %24 : vector<16x128xf32> to vector<16x128xbf16>
    %c1_18 = arith.constant 1 : index
    %c0_19 = arith.constant 0 : index
    %c0_20 = arith.constant 0 : index
    %26 = vector.load %arg3[%c1_18, %c0_19, %c0_20] : memref<3x16x128xbf16, #tpu.memory_space<vmem>>, vector<1x16x128xbf16>
    %27 = vector.shape_cast %26 : vector<1x16x128xbf16> to vector<16x128xbf16>
    %28 = vector.shape_cast %25 : vector<16x128xbf16> to vector<1x16x128xbf16>
    tpu.vector_store %arg3[%c1_18, %c0_19, %c0_20], %28 {strides = array<i32>} : memref<3x16x128xbf16, #tpu.memory_space<vmem>>, vector<1x16x128xbf16>,
    %29 = arith.truncf %24 : vector<16x128xf32> to vector<16x128xbf16>
    %c2 = arith.constant 2 : index
    %c0_21 = arith.constant 0 : index
    %c0_22 = arith.constant 0 : index
    %30 = vector.load %arg1[%c2, %c0_21, %c0_22] : memref<3x128x128xbf16, #tpu.memory_space<vmem>>, vector<1x128x128xbf16>
    %31 = vector.shape_cast %30 : vector<1x128x128xbf16> to vector<128x128xbf16>
    %cst_23 = arith.constant dense<0.000000e+00> : vector<16x128xf32>
    %32 = tpu.matmul %29, %31, %cst_23 {dimension_numbers = #tpu.dot_dimension_numbers<[1], [0], [0], [1], [0, 0, 1, 1], [], []>} : vector<16x128xbf16>, vector<128x128xbf16>, vector<16x128xf32> -> vector<16x128xf32>
    %c2_24 = arith.constant 2 : index
    %c0_25 = arith.constant 0 : index
    %c0_26 = arith.constant 0 : index
    %33 = vector.load %arg2[%c2_24, %c0_25, %c0_26] : memref<3x1x128xf32, #tpu.memory_space<vmem>>, vector<1x1x128xf32>
    %34 = vector.shape_cast %33 : vector<1x1x128xf32> to vector<1x128xf32>
    %35 = vector.broadcast %34 : vector<1x128xf32> to vector<16x128xf32>
    %36 = arith.addf %32, %35 : vector<16x128xf32>
    %37 = arith.truncf %36 : vector<16x128xf32> to vector<16x128xbf16>
    %c2_27 = arith.constant 2 : index
    %c0_28 = arith.constant 0 : index
    %c0_29 = arith.constant 0 : index
    %38 = vector.load %arg3[%c2_27, %c0_28, %c0_29] : memref<3x16x128xbf16, #tpu.memory_space<vmem>>, vector<1x16x128xbf16>
    %39 = vector.shape_cast %38 : vector<1x16x128xbf16> to vector<16x128xbf16>
    %40 = vector.shape_cast %37 : vector<16x128xbf16> to vector<1x16x128xbf16>
    tpu.vector_store %arg3[%c2_27, %c0_28, %c0_29], %40 {strides = array<i32>} : memref<3x16x128xbf16, #tpu.memory_space<vmem>>, vector<1x16x128xbf16>,
    return
  }
}

</mosaic_0001>

<llo_original>
// kernel: tpu_custom_call.1
$region0: #{tpu_custom_call.1}
  #allocation0 [shape = 'u32[]', space=smem, size = 0x4, offset = 0x4, fixed_abs, tag = 'smem constant byte address 0x4 - core index']
  #allocation1 [shape = 'u32[72,128]{1,0:T(1,128)}', space=vmem, size = 0x9000, scoped, tag = 'internal scratch']
  %s0 = inlined_call_operand.hbm [shape: f32[16,128], index: 0, kind: input, shape index: {}]
  %s1 = inlined_call_operand.hbm [shape: bf16[3,128,128], index: 1, kind: input, shape index: {}]
  %s2 = inlined_call_operand.hbm [shape: f32[3,1,128], index: 2, kind: input, shape index: {}]
  %s3 = inlined_call_operand.hbm [shape: bf16[3,16,128], index: 3, kind: output, shape index: {}]
  %s4 = sld [smem:[#allocation0]]
  $region34: #{tpu_custom_call.1} parent=0
    _
  %s6 = ssub.s32 1, %s4
  %s7 = scalar_select 0, %s6, %s4
  $region1: #{tpu_custom_call.1} parent=0
    #allocation2 [shape = 'u8[8192]{0}', space=vmem, size = 0x2000, scoped, tag = 'input window, operand 0, single buffered']
    #allocation3 [shape = 's32[1]{0}', space=sflag, size = 0x4, scoped, tag = 'scoped memory for tpu_custom_call.1']
    #allocation4 [shape = 's32[1]{0}', space=sflag, size = 0x4, scoped, tag = 'scoped memory for tpu_custom_call.1']
    #allocation5 [shape = 'u8[98304]{0}', space=vmem, size = 0x18000, scoped, tag = 'input window, operand 1, single buffered']
    #allocation6 [shape = 's32[1]{0}', space=sflag, size = 0x4, scoped, tag = 'scoped memory for tpu_custom_call.1']
    #allocation7 [shape = 'u8[1536]{0}', space=vmem, size = 0x800, scoped, tag = 'input window, operand 2, single buffered']
    #allocation8 [shape = 'u8[12288]{0}', space=vmem, size = 0x3000, scoped, tag = 'output window, operand 0, single buffered']
    %8 = vsyncpa [#allocation3], 0
    %9 = vsyncpa [#allocation6], 0
    %10 = vsyncpa [#allocation4], 0
    // Predicated region
    $region2: #{tpu_custom_call.1} parent=1 // pred_check
      _
    $region3: #{tpu_custom_call.1} parent=1 // pred_check_branch
      %12 = sbr.rel (0) target = $region5
    $region4: #{tpu_custom_call.1} parent=1 // pred_region
      %14 = vsyncadd [#allocation3], 0
      %s15 = sshll.u32 %s0, 4
      %s16 = int_to_ptr.hbm [resolvable:$true] %s15
      %s17 = sshll.u32 [#allocation2], 4
      %s18 = int_to_ptr.vmem [resolvable:$true] %s17
      %23 = dma.hbm_to_vmem [thread:$0]  %s16, 256, %s18, [#allocation3], 128, 128, 8
    $region5: #{tpu_custom_call.1} parent=1 // pred_fallthru
      _
    // Predicated region
    $region6: #{tpu_custom_call.1} parent=1 // pred_check
      _
    $region7: #{tpu_custom_call.1} parent=1 // pred_check_branch
      %25 = sbr.rel (0) target = $region9
    $region8: #{tpu_custom_call.1} parent=1 // pred_region
      %27 = vsyncadd [#allocation6], 0
      %s28 = sshll.u32 %s1, 4
      %s29 = int_to_ptr.hbm [resolvable:$true] %s28
      %s30 = sshll.u32 [#allocation5], 4
      %s31 = int_to_ptr.vmem [resolvable:$true] %s30
      %36 = dma.hbm_to_vmem [thread:$0]  %s29, 3072, %s31, [#allocation6], 64, 64, 4
    $region9: #{tpu_custom_call.1} parent=1 // pred_fallthru
      _
    // Predicated region
    $region10: #{tpu_custom_call.1} parent=1 // pred_check
      _
    $region11: #{tpu_custom_call.1} parent=1 // pred_check_branch
      %38 = sbr.rel (0) target = $region13
    $region12: #{tpu_custom_call.1} parent=1 // pred_region
      %40 = vsyncadd [#allocation6], 0
      %s41 = sshll.u32 %s2, 4
      %s42 = int_to_ptr.hbm [resolvable:$true] %s41
      %s43 = sshll.u32 [#allocation7], 4
      %s44 = int_to_ptr.vmem [resolvable:$true] %s43
      %49 = dma.hbm_to_vmem [thread:$0]  %s42, 48, %s44, [#allocation6], 16, 16, 1
    $region13: #{tpu_custom_call.1} parent=1 // pred_fallthru
      _
    // Predicated region
    $region14: #{tpu_custom_call.1} parent=1 // pred_check
      _
    $region15: #{tpu_custom_call.1} parent=1 // pred_check_branch
      %51 = sbr.rel (0) target = $region17
    $region16: #{tpu_custom_call.1} parent=1 // pred_region
      %53 = dma.done [#allocation3], 256
    $region17: #{tpu_custom_call.1} parent=1 // pred_fallthru
      _
    // Predicated region
    $region18: #{tpu_custom_call.1} parent=1 // pred_check
      _
    $region19: #{tpu_custom_call.1} parent=1 // pred_check_branch
      %55 = sbr.rel (0) target = $region21
    $region20: #{tpu_custom_call.1} parent=1 // pred_region
      %57 = dma.done [#allocation6], 3072
    $region21: #{tpu_custom_call.1} parent=1 // pred_fallthru
      _
    // Predicated region
    $region22: #{tpu_custom_call.1} parent=1 // pred_check
      _
    $region23: #{tpu_custom_call.1} parent=1 // pred_check_branch
      %59 = sbr.rel (0) target = $region25
    $region24: #{tpu_custom_call.1} parent=1 // pred_region
      %61 = dma.done [#allocation6], 48
    $region25: #{tpu_custom_call.1} parent=1 // pred_fallthru
      _
    %v62 = vld [vmem:[#allocation2] sm:$0xff]
    %v63 = vld [vmem:[#allocation2 + $0x8] sm:$0xff]
    %v64 = vpack.c.bf16 %v63, %v62
    %v65 = vld [vmem:[#allocation5] sm:$0xf]
    %v66 = vld [vmem:[#allocation5 + $0x4] sm:$0xf]
    %v67 = vld [vmem:[#allocation5 + $0x8] sm:$0xf]
    %v68 = vld [vmem:[#allocation5 + $0xc] sm:$0xf]
    %v69 = vld [vmem:[#allocation5 + $0x10] sm:$0xf]
    %v70 = vld [vmem:[#allocation5 + $0x14] sm:$0xf]
    %v71 = vld [vmem:[#allocation5 + $0x18] sm:$0xf]
    %v72 = vld [vmem:[#allocation5 + $0x1c] sm:$0xf]
    %v73 = vld [vmem:[#allocation5 + $0x20] sm:$0xf]
    %v74 = vld [vmem:[#allocation5 + $0x24] sm:$0xf]
    %v75 = vld [vmem:[#allocation5 + $0x28] sm:$0xf]
    %v76 = vld [vmem:[#allocation5 + $0x2c] sm:$0xf]
    %v77 = vld [vmem:[#allocation5 + $0x30] sm:$0xf]
    %v78 = vld [vmem:[#allocation5 + $0x34] sm:$0xf]
    %v79 = vld [vmem:[#allocation5 + $0x38] sm:$0xf]
    %v80 = vld [vmem:[#allocation5 + $0x3c] sm:$0xf]
    %v81 = vld [vmem:[#allocation7] sm:$0x1]
    %v83 = vperm.slane %v81, 0
    %v101 = vunpack.c.l.b16 %v65
    %v102 = vunpack.c.l.b16 %v66
    %v103 = vunpack.c.l.b16 %v67
    %v104 = vunpack.c.l.b16 %v68
    %v105 = vunpack.c.l.b16 %v69
    %v106 = vunpack.c.l.b16 %v70
    %v107 = vunpack.c.l.b16 %v71
    %v108 = vunpack.c.l.b16 %v72
    %v109 = vunpack.c.l.b16 %v73
    %v110 = vunpack.c.l.b16 %v74
    %v111 = vunpack.c.l.b16 %v75
    %v112 = vunpack.c.l.b16 %v76
    %v113 = vunpack.c.l.b16 %v77
    %v114 = vunpack.c.l.b16 %v78
    %v115 = vunpack.c.l.b16 %v79
    %v116 = vunpack.c.l.b16 %v80
    %v117 = vpack.c.b16 %v102, %v101
    %v118 = vpack.c.b16 %v104, %v103
    %v119 = vpack.c.b16 %v106, %v105
    %v120 = vpack.c.b16 %v108, %v107
    %v121 = vpack.c.b16 %v110, %v109
    %v122 = vpack.c.b16 %v112, %v111
    %v123 = vpack.c.b16 %v114, %v113
    %v124 = vpack.c.b16 %v116, %v115
    %133 = vmatpush.bf16.msra.mxu0 %v124
    %134 = vmatpush.bf16.msra.mxu0 %v123
    %135 = vmatpush.bf16.msra.mxu0 %v122
    %136 = vmatpush.bf16.msra.mxu0 %v121
    %137 = vmatpush.bf16.msra.mxu0 %v120
    %138 = vmatpush.bf16.msra.mxu0 %v119
    %139 = vmatpush.bf16.msra.mxu0 %v118
    %140 = vmatpush.bf16.msra.mxu0 %v117
    %141 = vmatmul.bf16.gmra.mxu0 %v64
    %v142 = vpop.f32.mrf.mxu0
    %v143 = vadd.f32 %v83, %v142
    %v144 = vpop.f32.mrf.mxu0
    %v145 = vadd.f32 %v83, %v144
    %146 = vdwg.mxu0
    %v147 = vmax.f32 %v143, 0.0
    %v148 = vmax.f32 %v145, 0.0
    %v149 = vpack.c.bf16 %v147, %v147
    %v150 = vpack.c.bf16 %v148, %v148
    %151 = vst [vmem:[#allocation8] sm:$0xf] %v149
    %152 = vst [vmem:[#allocation8 + $0x4] sm:$0xf] %v150
    %s153 = scalar_lea.vmem [#allocation5], 64
    %v154 = vld [vmem:[%s153] sm:$0xf]
    %v155 = vld [vmem:[%s153 + $0x4] sm:$0xf]
    %v156 = vld [vmem:[%s153 + $0x8] sm:$0xf]
    %v157 = vld [vmem:[%s153 + $0xc] sm:$0xf]
    %v158 = vld [vmem:[%s153 + $0x10] sm:$0xf]
    %v159 = vld [vmem:[%s153 + $0x14] sm:$0xf]
    %v160 = vld [vmem:[%s153 + $0x18] sm:$0xf]
    %v161 = vld [vmem:[%s153 + $0x1c] sm:$0xf]
    %v162 = vld [vmem:[%s153 + $0x20] sm:$0xf]
    %v163 = vld [vmem:[%s153 + $0x24] sm:$0xf]
    %v164 = vld [vmem:[%s153 + $0x28] sm:$0xf]
    %v165 = vld [vmem:[%s153 + $0x2c] sm:$0xf]
    %v166 = vld [vmem:[%s153 + $0x30] sm:$0xf]
    %v167 = vld [vmem:[%s153 + $0x34] sm:$0xf]
    %v168 = vld [vmem:[%s153 + $0x38] sm:$0xf]
    %v169 = vld [vmem:[%s153 + $0x3c] sm:$0xf]
    %s170 = scalar_lea.vmem [#allocation7], 1
    %v171 = vld [vmem:[%s170] sm:$0x1]
    %v173 = vperm.slane %v171, 0
    %v177 = vunpack.c.l.b16 %v149
    %v178 = vunpack.c.l.b16 %v150
    %v179 = vpack.c.b16 %v178, %v177
    %v197 = vunpack.c.l.b16 %v154
    %v198 = vunpack.c.l.b16 %v155
    %v199 = vunpack.c.l.b16 %v156
    %v200 = vunpack.c.l.b16 %v157
    %v201 = vunpack.c.l.b16 %v158
    %v202 = vunpack.c.l.b16 %v159
    %v203 = vunpack.c.l.b16 %v160
    %v204 = vunpack.c.l.b16 %v161
    %v205 = vunpack.c.l.b16 %v162
    %v206 = vunpack.c.l.b16 %v163
    %v207 = vunpack.c.l.b16 %v164
    %v208 = vunpack.c.l.b16 %v165
    %v209 = vunpack.c.l.b16 %v166
    %v210 = vunpack.c.l.b16 %v167
    %v211 = vunpack.c.l.b16 %v168
    %v212 = vunpack.c.l.b16 %v169
    %v213 = vpack.c.b16 %v198, %v197
    %v214 = vpack.c.b16 %v200, %v199
    %v215 = vpack.c.b16 %v202, %v201
    %v216 = vpack.c.b16 %v204, %v203
    %v217 = vpack.c.b16 %v206, %v205
    %v218 = vpack.c.b16 %v208, %v207
    %v219 = vpack.c.b16 %v210, %v209
    %v220 = vpack.c.b16 %v212, %v211
    %229 = vmatpush.bf16.msra.mxu0 %v220
    %230 = vmatpush.bf16.msra.mxu0 %v219
    %231 = vmatpush.bf16.msra.mxu0 %v218
    %232 = vmatpush.bf16.msra.mxu0 %v217
    %233 = vmatpush.bf16.msra.mxu0 %v216
    %234 = vmatpush.bf16.msra.mxu0 %v215
    %235 = vmatpush.bf16.msra.mxu0 %v214
    %236 = vmatpush.bf16.msra.mxu0 %v213
    %237 = vmatmul.bf16.gmra.mxu0 %v179
    %v238 = vpop.f32.mrf.mxu0
    %v239 = vadd.f32 %v173, %v238
    %v240 = vpop.f32.mrf.mxu0
    %v241 = vadd.f32 %v173, %v240
    %242 = vdwg.mxu0
    %v243 = vmax.f32 %v239, 0.0
    %v244 = vmax.f32 %v241, 0.0
    %v245 = vpack.c.bf16 %v243, %v243
    %v246 = vpack.c.bf16 %v244, %v244
    %s247 = scalar_lea.vmem [#allocation8], 8
    %248 = vst [vmem:[%s247] sm:$0xf] %v245
    %249 = vst [vmem:[%s247 + $0x4] sm:$0xf] %v246
    %s250 = scalar_lea.vmem [#allocation5], 128
    %v251 = vld [vmem:[%s250] sm:$0xf]
    %v252 = vld [vmem:[%s250 + $0x4] sm:$0xf]
    %v253 = vld [vmem:[%s250 + $0x8] sm:$0xf]
    %v254 = vld [vmem:[%s250 + $0xc] sm:$0xf]
    %v255 = vld [vmem:[%s250 + $0x10] sm:$0xf]
    %v256 = vld [vmem:[%s250 + $0x14] sm:$0xf]
    %v257 = vld [vmem:[%s250 + $0x18] sm:$0xf]
    %v258 = vld [vmem:[%s250 + $0x1c] sm:$0xf]
    %v259 = vld [vmem:[%s250 + $0x20] sm:$0xf]
    %v260 = vld [vmem:[%s250 + $0x24] sm:$0xf]
    %v261 = vld [vmem:[%s250 + $0x28] sm:$0xf]
    %v262 = vld [vmem:[%s250 + $0x2c] sm:$0xf]
    %v263 = vld [vmem:[%s250 + $0x30] sm:$0xf]
    %v264 = vld [vmem:[%s250 + $0x34] sm:$0xf]
    %v265 = vld [vmem:[%s250 + $0x38] sm:$0xf]
    %v266 = vld [vmem:[%s250 + $0x3c] sm:$0xf]
    %s267 = scalar_lea.vmem [#allocation7], 2
    %v268 = vld [vmem:[%s267] sm:$0x1]
    %v270 = vperm.slane %v268, 0
    %v274 = vunpack.c.l.b16 %v245
    %v275 = vunpack.c.l.b16 %v246
    %v276 = vpack.c.b16 %v275, %v274
    %v294 = vunpack.c.l.b16 %v251
    %v295 = vunpack.c.l.b16 %v252
    %v296 = vunpack.c.l.b16 %v253
    %v297 = vunpack.c.l.b16 %v254
    %v298 = vunpack.c.l.b16 %v255
    %v299 = vunpack.c.l.b16 %v256
    %v300 = vunpack.c.l.b16 %v257
    %v301 = vunpack.c.l.b16 %v258
    %v302 = vunpack.c.l.b16 %v259
    %v303 = vunpack.c.l.b16 %v260
    %v304 = vunpack.c.l.b16 %v261
    %v305 = vunpack.c.l.b16 %v262
    %v306 = vunpack.c.l.b16 %v263
    %v307 = vunpack.c.l.b16 %v264
    %v308 = vunpack.c.l.b16 %v265
    %v309 = vunpack.c.l.b16 %v266
    %v310 = vpack.c.b16 %v295, %v294
    %v311 = vpack.c.b16 %v297, %v296
    %v312 = vpack.c.b16 %v299, %v298
    %v313 = vpack.c.b16 %v301, %v300
    %v314 = vpack.c.b16 %v303, %v302
    %v315 = vpack.c.b16 %v305, %v304
    %v316 = vpack.c.b16 %v307, %v306
    %v317 = vpack.c.b16 %v309, %v308
    %326 = vmatpush.bf16.msra.mxu0 %v317
    %327 = vmatpush.bf16.msra.mxu0 %v316
    %328 = vmatpush.bf16.msra.mxu0 %v315
    %329 = vmatpush.bf16.msra.mxu0 %v314
    %330 = vmatpush.bf16.msra.mxu0 %v313
    %331 = vmatpush.bf16.msra.mxu0 %v312
    %332 = vmatpush.bf16.msra.mxu0 %v311
    %333 = vmatpush.bf16.msra.mxu0 %v310
    %334 = vmatmul.bf16.gmra.mxu0 %v276
    %v335 = vpop.f32.mrf.mxu0
    %v336 = vadd.f32 %v270, %v335
    %v337 = vpop.f32.mrf.mxu0
    %v338 = vadd.f32 %v270, %v337
    %339 = vdwg.mxu0
    %v340 = vpack.c.bf16 %v336, %v336
    %v341 = vpack.c.bf16 %v338, %v338
    %s342 = scalar_lea.vmem [#allocation8], 16
    %343 = vst [vmem:[%s342] sm:$0xf] %v340
    %344 = vst [vmem:[%s342 + $0x4] sm:$0xf] %v341
    // Predicated region
    $region26: #{tpu_custom_call.1} parent=1 // pred_check
      _
    $region27: #{tpu_custom_call.1} parent=1 // pred_check_branch
      %346 = sbr.rel (0) target = $region29
    $region28: #{tpu_custom_call.1} parent=1 // pred_region
      %348 = vsyncadd [#allocation4], 0
      %s349 = sshll.u32 [#allocation8], 4
      %s350 = int_to_ptr.vmem [resolvable:$true] %s349
      %s351 = sshll.u32 %s3, 4
      %s352 = int_to_ptr.hbm [resolvable:$true] %s351
      %357 = dma.vmem_to_hbm [thread:$0]  %s350, 384, %s352, [#allocation4], 64, 64, 4
    $region29: #{tpu_custom_call.1} parent=1 // pred_fallthru
      _
    // Predicated region
    $region30: #{tpu_custom_call.1} parent=1 // pred_check
      _
    $region31: #{tpu_custom_call.1} parent=1 // pred_check_branch
      %359 = sbr.rel (0) target = $region33
    $region32: #{tpu_custom_call.1} parent=1 // pred_region
      %361 = dma.done [#allocation4], 384
    $region33: #{tpu_custom_call.1} parent=1 // pred_fallthru
      _
    %362 = vsyncpa [#allocation3], 1
    %363 = vsyncpa [#allocation6], 1
    %364 = vsyncpa [#allocation4], 1

</llo_original>
